<compile_context>
chip_gen: v7x
topology: tpu7x:2x2x1
jax: 0.10.0
libtpu: 0.0.40
codegen_flags: <defaults>
</compile_context>

<pallas_src>
import functools
from collections import namedtuple

import jax
import jax.numpy as jnp
from jax.experimental import pallas as pl
from jax.experimental.pallas import tpu as pltpu


def _round_up(a, b):
    return (a + b - 1) // b * b


# ----------------------------------------------------------------------------- config
HWConfig = namedtuple("HWConfig", ["vmem_limit", "tm_target", "gelu_dtype", "two_cores"])


def _hw_config():
    kind = ""
    try:
        kind = jax.devices()[0].device_kind.lower()
    except Exception:  # pragma: no cover - defensive
        pass

    is_v7 = "v7" in kind
    is_v6 = "v6" in kind
    is_v5e = ("v5 lite" in kind) or ("v5e" in kind) or ("v5litepod" in kind)
    two_cores = is_v7 or ("v4" in kind) or ("v5p" in kind)

    if is_v7:
        vmem_limit = 48 * 1024 * 1024     # 64 MiB physical per TC -> leave headroom
        tm_target = 512
        gelu_dtype = jnp.bfloat16         # bf16 VPU/EUP
    elif is_v6:
        vmem_limit = 100 * 1024 * 1024    # of 128 MiB physical
        tm_target = 512
        gelu_dtype = jnp.bfloat16
    elif is_v5e:
        vmem_limit = 100 * 1024 * 1024    # of 128 MiB physical
        tm_target = 256
        gelu_dtype = jnp.float32          # v5e VPU/EUP: no bf16
    else:
        vmem_limit = 64 * 1024 * 1024     # conservative default for unknown chips
        tm_target = 256
        gelu_dtype = jnp.float32

    # Refine with the runtime-reported VMEM capacity when available.
    try:
        cap = int(pltpu.get_tpu_info().vmem_capacity_bytes)
        vmem_limit = min(vmem_limit, int(cap * 0.8))
    except Exception:
        pass

    return HWConfig(vmem_limit, tm_target, gelu_dtype, two_cores)


def _pick_tm(n, target, sub, two_cores):
    """Row-tile size: large, sublane-aligned, dividing N when possible."""
    target = max(sub, _round_up(target, sub))
    if two_cores:
        # Keep >= 2 row tiles so both TensorCores get work (megacore sharding).
        target = min(target, max(sub, _round_up(pl.cdiv(n, 2), sub)))
    if n <= target:
        return _round_up(n, sub)
    # Prefer a tile that divides N exactly (skips row padding + output slice).
    for cand in range(target, target // 2 - 1, -sub):
        if cand > 0 and n % cand == 0:
            return cand
    return target


# ----------------------------------------------------------------------------- kernel
def ffn_kernel(x_ref, gamma_ref, beta_ref, w1_ref, b1_ref, w2_ref, b2_ref, o_ref,
               xn_ref, acc_ref, *, true_e, gelu_dtype):
    """Grid = (row tiles [parallel], hidden blocks [arbitrary, last]).

    x_ref:  (tm, Ep) row tile, resident across the hidden axis.
    w1_ref: (Ep, tk) streamed column block of W1^T.
    w2_ref: (tk, Ep) streamed row block of W2^T.
    xn_ref: (tm, Ep) bf16 scratch — LayerNorm output cached per row tile.
    acc_ref:(tm, Ep) f32 scratch — output accumulator over hidden blocks.
    """
    h_idx = pl.program_id(1)
    n_h = pl.num_programs(1)

    # ---- h == 0: LayerNorm once per row tile, cache xn, zero the accumulator ----
    @pl.when(h_idx == 0)
    def _():
        xf = x_ref[...].astype(jnp.float32)
        ep = xf.shape[-1]
        inv_e = 1.0 / float(true_e)
        if ep != true_e:
            # Embedding dim was lane-padded with zeros; mask padded lanes out of the
            # statistics so mean/var match the unpadded module exactly.
            lane = jax.lax.broadcasted_iota(jnp.int32, xf.shape, dimension=1)
            valid = lane < true_e
            mu = jnp.sum(jnp.where(valid, xf, 0.0), axis=-1, keepdims=True) * inv_e
            d = jnp.where(valid, xf - mu, 0.0)
        else:
            mu = jnp.mean(xf, axis=-1, keepdims=True)
            d = xf - mu
        var = jnp.sum(d * d, axis=-1, keepdims=True) * inv_e
        xn = d * jax.lax.rsqrt(var + 1e-5) * gamma_ref[...].astype(jnp.float32) \
            + beta_ref[...].astype(jnp.float32)
        xn_ref[...] = xn.astype(xn_ref.dtype)           # cached (bf16) LN output
        acc_ref[...] = jnp.zeros_like(acc_ref)

    # ---- per hidden block: linear1 column block -> GELU -> linear2 row block ----
    # MXU: bf16 operands, f32 accumulation.
    h = jnp.dot(xn_ref[...], w1_ref[...], preferred_element_type=jnp.float32)
    h = h.astype(gelu_dtype) + b1_ref[...].astype(gelu_dtype)
    # tanh-GELU -> EUP slot (bf16 on v6e/v7x, f32 on v5e).
    h = jax.nn.gelu(h, approximate=True)
    # dropout: identity (inference).  TODO(synk): training-mode dropout (pltpu.prng_*).
    acc_ref[...] += jnp.dot(h.astype(jnp.bfloat16), w2_ref[...],
                            preferred_element_type=jnp.float32)

    # ---- h == last: bias, residual (re-read x — it's resident in VMEM), store ----
    @pl.when(h_idx == n_h - 1)
    def _():
        y = acc_ref[...] + b2_ref[...].astype(jnp.float32)
        o_ref[...] = (x_ref[...].astype(jnp.float32) + y).astype(o_ref.dtype)


# -------------------------------------------------------------------------- wrappers
def prepare_ffn_params(gamma, beta, w1_t, b1, w2_t, b2, *, tk=512, use_bf16_matmul=True):
    """One-time parameter preparation (outside the per-forward path).

    Pads everything to lane-dense (multiples of 128) shapes and casts the weights to
    bf16.  w1_t: (E, H) = linear1.weight.T ; w2_t: (H, E) = linear2.weight.T.
    """
    E = int(gamma.shape[0])
    H = int(b1.shape[0])
    Ep = _round_up(E, 128)
    tk = max(128, _round_up(min(tk, _round_up(H, 128)), 128))
    Hp = _round_up(H, tk)
    w_dtype = jnp.bfloat16 if use_bf16_matmul else jnp.float32

    def pad2(a, rows, cols, dtype):
        a = a.astype(dtype)
        pr, pc = rows - a.shape[0], cols - a.shape[1]
        if pr or pc:
            a = jnp.pad(a, ((0, pr), (0, pc)))
        return a

    return dict(
        E=E, H=H, Ep=Ep, Hp=Hp, tk=tk, w_dtype=w_dtype,
        gamma=pad2(gamma.reshape(1, E), 1, Ep, jnp.float32),
        beta=pad2(beta.reshape(1, E), 1, Ep, jnp.float32),
        w1=pad2(w1_t, Ep, Hp, w_dtype),
        b1=pad2(b1.reshape(1, H), 1, Hp, jnp.float32),
        w2=pad2(w2_t, Hp, Ep, w_dtype),
        b2=pad2(b2.reshape(1, E), 1, Ep, jnp.float32),
    )


def ffn_forward(x, params, *, tm=None, training=False, dropout_p=0.0):
    """x: (..., E). params: output of prepare_ffn_params. Returns same shape/dtype."""
    if training and dropout_p > 0.0:
        # TODO(synk): training-mode stochastic dropout is not implemented.
        raise NotImplementedError("training-mode dropout not implemented")

    cfg = _hw_config()
    E, Ep, Hp, tk = params["E"], params["Ep"], params["Hp"], params["tk"]
    w_dtype = params["w_dtype"]

    orig_shape = x.shape
    assert orig_shape[-1] == E, "last dim of x must equal embed_dim"
    x2 = x.reshape(-1, E)
    N = x2.shape[0]

    x_itemsize = jnp.dtype(x.dtype).itemsize
    w_itemsize = jnp.dtype(w_dtype).itemsize
    sub = 16 if x.dtype == jnp.bfloat16 else 8

    tm_target = tm if tm is not None else cfg.tm_target
    tm = _pick_tm(N, tm_target, sub, cfg.two_cores)

    # Shrink tm until the VMEM working set fits the (generation-aware) budget.
    def _vmem_bytes(tm_):
        return (tm_ * Ep * (4 + w_itemsize)               # f32 acc + cached xn (scratch)
                + 2 * 2 * tm_ * Ep * x_itemsize           # x in + out, double-buffered
                + 2 * 2 * Ep * tk * w_itemsize            # W1/W2 blocks, double-buffered
                + tm_ * tk * 4                            # hidden intermediate
                + 6 * max(Ep, tk) * 4)                    # gamma/beta/biases
    while tm > sub and _vmem_bytes(tm) > int(cfg.vmem_limit * 0.9):
        tm = _round_up(tm // 2, sub)

    Np = _round_up(N, tm)
    need_pad = (Np != N) or (Ep != E)
    x2p = jnp.pad(x2, ((0, Np - N), (0, Ep - E))) if need_pad else x2

    grid = (Np // tm, Hp // tk)

    flops = 4 * Np * Ep * Hp                      # two GEMMs, 2*M*K*N each
    transcendentals = Np * Hp + Np                # GELU tanh + per-row rsqrt
    weight_bytes = (params["w1"].size + params["w2"].size) * w_itemsize
    vec_bytes = (params["gamma"].size + params["beta"].size
                 + params["b1"].size + params["b2"].size) * 4
    bytes_accessed = (x2p.size * x_itemsize + Np * Ep * x_itemsize
                      + weight_bytes * (Np // tm) + vec_bytes)

    out = pl.pallas_call(
        functools.partial(ffn_kernel, true_e=E, gelu_dtype=cfg.gelu_dtype),
        out_shape=jax.ShapeDtypeStruct((Np, Ep), x.dtype),
        grid_spec=pltpu.PrefetchScalarGridSpec(
            num_scalar_prefetch=0,
            grid=grid,
            in_specs=[
                pl.BlockSpec((tm, Ep), lambda i, h: (i, 0)),   # x row tile (resident over h)
                pl.BlockSpec((1, Ep), lambda i, h: (0, 0)),    # gamma
                pl.BlockSpec((1, Ep), lambda i, h: (0, 0)),    # beta
                pl.BlockSpec((Ep, tk), lambda i, h: (0, h)),   # W1^T column block (streamed)
                pl.BlockSpec((1, tk), lambda i, h: (0, h)),    # b1 block
                pl.BlockSpec((tk, Ep), lambda i, h: (h, 0)),   # W2^T row block (streamed)
                pl.BlockSpec((1, Ep), lambda i, h: (0, 0)),    # b2
            ],
            out_specs=pl.BlockSpec((tm, Ep), lambda i, h: (i, 0)),
            scratch_shapes=[
                pltpu.VMEM((tm, Ep), w_dtype),      # cached LayerNorm output
                pltpu.VMEM((tm, Ep), jnp.float32),  # f32 output accumulator
            ],
        ),
        compiler_params=pltpu.CompilerParams(
            dimension_semantics=("parallel", "arbitrary"),
            vmem_limit_bytes=cfg.vmem_limit,
        ),
        cost_estimate=pl.CostEstimate(
            flops=flops,
            transcendentals=transcendentals,
            bytes_accessed=bytes_accessed,
        ),
    )(x2p, params["gamma"], params["beta"], params["w1"], params["b1"],
      params["w2"], params["b2"])

    if need_pad:
        out = out[:N, :E]
    return out.reshape(orig_shape)


# -------------------------------------------------------------------- init & reference
def init_ffn_params(key, embed_dim, hidden_dim, dtype=jnp.float32):
    """Synthetic init matching the PyTorch module.

    linear1: nn.Linear(E, H) -> weight (H, E), bias (H,)
    linear2: zero_module(nn.Linear(H, E)) -> zeros
    norm:    nn.LayerNorm(E) -> gamma ones, beta zeros
    Weights are returned pre-transposed for row-major matmul inside the kernel.
    """
    k1, k2 = jax.random.split(key)
    bound = 1.0 / (embed_dim ** 0.5)
    w1 = jax.random.uniform(k1, (hidden_dim, embed_dim), dtype, -bound, bound)
    b1 = jax.random.uniform(k2, (hidden_dim,), dtype, -bound, bound)
    w2 = jnp.zeros((embed_dim, hidden_dim), dtype)   # zero_module
    b2 = jnp.zeros((embed_dim,), dtype)
    gamma = jnp.ones((embed_dim,), dtype)
    beta = jnp.zeros((embed_dim,), dtype)
    return gamma, beta, w1.T, b1, w2.T, b2


def ffn_reference(x, gamma, beta, w1_t, b1, w2_t, b2):
    """Pure-JAX reference matching the kernel numerics (bf16 operands, f32 acc, tanh GELU)."""
    xf = x.astype(jnp.float32)
    mu = jnp.mean(xf, axis=-1, keepdims=True)
    var = jnp.mean((xf - mu) ** 2, axis=-1, keepdims=True)
    xn = (xf - mu) * jax.lax.rsqrt(var + 1e-5) * gamma + beta
    bf = lambda a: a.astype(jnp.bfloat16).astype(jnp.float32)
    h = jnp.dot(bf(xn), bf(w1_t), precision=jax.lax.Precision.HIGHEST) + b1
    h = jax.nn.gelu(h, approximate=True)
    y = jnp.dot(bf(h), bf(w2_t), precision=jax.lax.Precision.HIGHEST) + b2
    return (xf + y).astype(x.dtype)


if __name__ == "__main__":
    key = jax.random.PRNGKey(0)
    batch, seq, embed_dim, hidden_dim = 2, 8, 32, 64
    dropout = 0.1  # identity in inference mode

    kx, kp, kw = jax.random.split(key, 3)
    x = jax.random.normal(kx, (batch, seq, embed_dim), jnp.float32)

    # Module-faithful init: linear2 is zero-initialized -> FFN must be a pure residual.
    raw = init_ffn_params(kp, embed_dim, hidden_dim)
    params = prepare_ffn_params(*raw)
    out = jax.block_until_ready(ffn_forward(x, params))
    assert out.shape == x.shape and out.dtype == x.dtype
    assert jnp.allclose(out, x, atol=1e-5), "zero_module residual check failed"

    # Numerics check with a non-zero linear2 so the full matmul/GELU path is exercised.
    gamma, beta, w1_t, b1, w2_t, b2 = raw
    bound2 = 1.0 / (hidden_dim ** 0.5)
    w2_t_nz = jax.random.uniform(kw, (hidden_dim, embed_dim), jnp.float32, -bound2, bound2)
    params_nz = prepare_ffn_params(gamma, beta, w1_t, b1, w2_t_nz, b2)
    out2 = jax.block_until_ready(ffn_forward(x, params_nz))
    ref2 = ffn_reference(x, gamma, beta, w1_t, b1, w2_t_nz, b2)
    assert jnp.allclose(out2, ref2, atol=2e-2, rtol=2e-2), "mismatch vs reference"

    print("KERNEL_OK")
</pallas_src>

<mosaic_0001>
module attributes {stable_mosaic.version = 11 : i64} {
  func.func @ffn_kernel(%arg0: i32, %arg1: i32, %arg2: memref<16x128xf32, #tpu.memory_space<vmem>>, %arg3: memref<1x128xf32, #tpu.memory_space<vmem>>, %arg4: memref<1x128xf32, #tpu.memory_space<vmem>>, %arg5: memref<128x128xbf16, #tpu.memory_space<vmem>>, %arg6: memref<1x128xf32, #tpu.memory_space<vmem>>, %arg7: memref<128x128xbf16, #tpu.memory_space<vmem>>, %arg8: memref<1x128xf32, #tpu.memory_space<vmem>>, %arg9: memref<16x128xf32, #tpu.memory_space<vmem>>, %arg10: memref<16x128xbf16, #tpu.memory_space<vmem>>, %arg11: memref<16x128xf32, #tpu.memory_space<vmem>>) attributes {dimension_semantics = [#tpu.dimension_semantics<parallel>, #tpu.dimension_semantics<arbitrary>], iteration_bounds = array<i64: 1, 1>, scalar_prefetch = 0 : i64, scratch_operands = 2 : i64, tpu.core_type = #tpu.core_type<tc>, window_params = [{transform_indices = @transform_0, window_bounds = array<i64: 16, 128>}, {pipeline_mode = #tpu.pipeline_mode<synchronous>, transform_indices = @transform_1, window_bounds = array<i64: 1, 128>}, {pipeline_mode = #tpu.pipeline_mode<synchronous>, transform_indices = @transform_2, window_bounds = array<i64: 1, 128>}, {transform_indices = @transform_3, window_bounds = array<i64: 128, 128>}, {transform_indices = @transform_4, window_bounds = array<i64: 1, 128>}, {transform_indices = @transform_5, window_bounds = array<i64: 128, 128>}, {pipeline_mode = #tpu.pipeline_mode<synchronous>, transform_indices = @transform_6, window_bounds = array<i64: 1, 128>}, {transform_indices = @transform_7, window_bounds = array<i64: 16, 128>}]} {
    %c0_i32 = arith.constant 0 : i32
    %0 = arith.cmpi eq, %arg1, %c0_i32 : i32
    %1 = arith.extui %0 : i1 to i32
    %c0_i32_0 = arith.constant 0 : i32
    %2 = arith.cmpi ne, %1, %c0_i32_0 : i32
    scf.if %2 {
      %c0_19 = arith.constant 0 : index
      %c0_20 = arith.constant 0 : index
      %31 = vector.load %arg2[%c0_19, %c0_20] : memref<16x128xf32, #tpu.memory_space<vmem>>, vector<16x128xf32>
      %32 = tpu.iota {dimensions = array<i32: 1>} : vector<16x128xi32>
      %c32_i32 = arith.constant 32 : i32
      %33 = vector.broadcast %c32_i32 : i32 to vector<16x128xi32>
      %34 = arith.cmpi slt, %32, %33 : vector<16x128xi32>
      %cst_21 = arith.constant 0.000000e+00 : f32
      %35 = vector.broadcast %cst_21 : f32 to vector<16x128xf32>
      %36 = arith.select %34, %31, %35 : vector<16x128xi1>, vector<16x128xf32>
      %cst_22 = arith.constant dense<0.000000e+00> : vector<16xf32>
      %37 = vector.multi_reduction <add>, %36, %cst_22 [1] : vector<16x128xf32> to vector<16xf32>
      %38 = vector.shape_cast %37 : vector<16xf32> to vector<16x1xf32>
      %cst_23 = arith.constant 3.125000e-02 : f32
      %39 = vector.broadcast %cst_23 : f32 to vector<16x1xf32>
      %40 = arith.mulf %38, %39 : vector<16x1xf32>
      %41 = vector.broadcast %40 : vector<16x1xf32> to vector<16x128xf32>
      %42 = arith.subf %31, %41 : vector<16x128xf32>
      %cst_24 = arith.constant 0.000000e+00 : f32
      %43 = vector.broadcast %cst_24 : f32 to vector<16x128xf32>
      %44 = arith.select %34, %42, %43 : vector<16x128xi1>, vector<16x128xf32>
      %45 = arith.mulf %44, %44 : vector<16x128xf32>
      %cst_25 = arith.constant dense<0.000000e+00> : vector<16xf32>
      %46 = vector.multi_reduction <add>, %45, %cst_25 [1] : vector<16x128xf32> to vector<16xf32>
      %47 = vector.shape_cast %46 : vector<16xf32> to vector<16x1xf32>
      %cst_26 = arith.constant 3.125000e-02 : f32
      %48 = vector.broadcast %cst_26 : f32 to vector<16x1xf32>
      %49 = arith.mulf %47, %48 : vector<16x1xf32>
      %cst_27 = arith.constant 9.99999974E-6 : f32
      %50 = vector.broadcast %cst_27 : f32 to vector<16x1xf32>
      %51 = arith.addf %49, %50 : vector<16x1xf32>
      %52 = math.rsqrt %51 : vector<16x1xf32>
      %53 = vector.broadcast %52 : vector<16x1xf32> to vector<16x128xf32>
      %54 = arith.mulf %44, %53 : vector<16x128xf32>
      %c0_28 = arith.constant 0 : index
      %c0_29 = arith.constant 0 : index
      %55 = vector.load %arg3[%c0_28, %c0_29] : memref<1x128xf32, #tpu.memory_space<vmem>>, vector<1x128xf32>
      %56 = vector.broadcast %55 : vector<1x128xf32> to vector<16x128xf32>
      %57 = arith.mulf %54, %56 : vector<16x128xf32>
      %c0_30 = arith.constant 0 : index
      %c0_31 = arith.constant 0 : index
      %58 = vector.load %arg4[%c0_30, %c0_31] : memref<1x128xf32, #tpu.memory_space<vmem>>, vector<1x128xf32>
      %59 = vector.broadcast %58 : vector<1x128xf32> to vector<16x128xf32>
      %60 = arith.addf %57, %59 : vector<16x128xf32>
      %61 = arith.truncf %60 : vector<16x128xf32> to vector<16x128xbf16>
      %c0_32 = arith.constant 0 : index
      %c0_33 = arith.constant 0 : index
      %62 = vector.load %arg10[%c0_32, %c0_33] : memref<16x128xbf16, #tpu.memory_space<vmem>>, vector<16x128xbf16>
      tpu.vector_store %arg10[%c0_32, %c0_33], %61 {strides = array<i32>} : memref<16x128xbf16, #tpu.memory_space<vmem>>, vector<16x128xbf16>,
      %cst_34 = arith.constant 0.000000e+00 : f32
      %63 = vector.broadcast %cst_34 : f32 to vector<16x128xf32>
      %c0_35 = arith.constant 0 : index
      %c0_36 = arith.constant 0 : index
      %64 = vector.load %arg11[%c0_35, %c0_36] : memref<16x128xf32, #tpu.memory_space<vmem>>, vector<16x128xf32>
      tpu.vector_store %arg11[%c0_35, %c0_36], %63 {strides = array<i32>} : memref<16x128xf32, #tpu.memory_space<vmem>>, vector<16x128xf32>,
    } else {
    }
    %c0 = arith.constant 0 : index
    %c0_1 = arith.constant 0 : index
    %3 = vector.load %arg10[%c0, %c0_1] : memref<16x128xbf16, #tpu.memory_space<vmem>>, vector<16x128xbf16>
    %c0_2 = arith.constant 0 : index
    %c0_3 = arith.constant 0 : index
    %4 = vector.load %arg5[%c0_2, %c0_3] : memref<128x128xbf16, #tpu.memory_space<vmem>>, vector<128x128xbf16>
    %cst = arith.constant dense<0.000000e+00> : vector<16x128xf32>
    %5 = tpu.matmul %3, %4, %cst {dimension_numbers = #tpu.dot_dimension_numbers<[1], [0], [0], [1], [0, 0, 1, 1], [], []>} : vector<16x128xbf16>, vector<128x128xbf16>, vector<16x128xf32> -> vector<16x128xf32>
    %c0_4 = arith.constant 0 : index
    %c0_5 = arith.constant 0 : index
    %6 = vector.load %arg6[%c0_4, %c0_5] : memref<1x128xf32, #tpu.memory_space<vmem>>, vector<1x128xf32>
    %7 = vector.broadcast %6 : vector<1x128xf32> to vector<16x128xf32>
    %8 = arith.addf %5, %7 : vector<16x128xf32>
    %9 = arith.mulf %8, %8 : vector<16x128xf32>
    %10 = arith.mulf %8, %9 : vector<16x128xf32>
    %cst_6 = arith.constant 4.471500e-02 : f32
    %11 = vector.broadcast %cst_6 : f32 to vector<16x128xf32>
    %12 = arith.mulf %11, %10 : vector<16x128xf32>
    %13 = arith.addf %8, %12 : vector<16x128xf32>
    %cst_7 = arith.constant 0.797884583 : f32
    %14 = vector.broadcast %cst_7 : f32 to vector<16x128xf32>
    %15 = arith.mulf %14, %13 : vector<16x128xf32>
    %16 = math.tanh %15 : vector<16x128xf32>
    %cst_8 = arith.constant 1.000000e+00 : f32
    %17 = vector.broadcast %cst_8 : f32 to vector<16x128xf32>
    %18 = arith.addf %17, %16 : vector<16x128xf32>
    %cst_9 = arith.constant 5.000000e-01 : f32
    %19 = vector.broadcast %cst_9 : f32 to vector<16x128xf32>
    %20 = arith.mulf %19, %18 : vector<16x128xf32>
    %21 = arith.mulf %8, %20 : vector<16x128xf32>
    %c0_10 = arith.constant 0 : index
    %c0_11 = arith.constant 0 : index
    %22 = vector.load %arg11[%c0_10, %c0_11] : memref<16x128xf32, #tpu.memory_space<vmem>>, vector<16x128xf32>
    %23 = arith.truncf %21 : vector<16x128xf32> to vector<16x128xbf16>
    %c0_12 = arith.constant 0 : index
    %c0_13 = arith.constant 0 : index
    %24 = vector.load %arg7[%c0_12, %c0_13] : memref<128x128xbf16, #tpu.memory_space<vmem>>, vector<128x128xbf16>
    %cst_14 = arith.constant dense<0.000000e+00> : vector<16x128xf32>
    %25 = tpu.matmul %23, %24, %cst_14 {dimension_numbers = #tpu.dot_dimension_numbers<[1], [0], [0], [1], [0, 0, 1, 1], [], []>} : vector<16x128xbf16>, vector<128x128xbf16>, vector<16x128xf32> -> vector<16x128xf32>
    %26 = arith.addf %22, %25 : vector<16x128xf32>
    %c0_15 = arith.constant 0 : index
    %c0_16 = arith.constant 0 : index
    %27 = vector.load %arg11[%c0_15, %c0_16] : memref<16x128xf32, #tpu.memory_space<vmem>>, vector<16x128xf32>
    tpu.vector_store %arg11[%c0_15, %c0_16], %26 {strides = array<i32>} : memref<16x128xf32, #tpu.memory_space<vmem>>, vector<16x128xf32>,
    %c0_i32_17 = arith.constant 0 : i32
    %28 = arith.cmpi eq, %arg1, %c0_i32_17 : i32
    %29 = arith.extui %28 : i1 to i32
    %c0_i32_18 = arith.constant 0 : i32
    %30 = arith.cmpi ne, %29, %c0_i32_18 : i32
    scf.if %30 {
      %c0_19 = arith.constant 0 : index
      %c0_20 = arith.constant 0 : index
      %31 = vector.load %arg11[%c0_19, %c0_20] : memref<16x128xf32, #tpu.memory_space<vmem>>, vector<16x128xf32>
      %c0_21 = arith.constant 0 : index
      %c0_22 = arith.constant 0 : index
      %32 = vector.load %arg8[%c0_21, %c0_22] : memref<1x128xf32, #tpu.memory_space<vmem>>, vector<1x128xf32>
      %33 = vector.broadcast %32 : vector<1x128xf32> to vector<16x128xf32>
      %34 = arith.addf %31, %33 : vector<16x128xf32>
      %c0_23 = arith.constant 0 : index
      %c0_24 = arith.constant 0 : index
      %35 = vector.load %arg2[%c0_23, %c0_24] : memref<16x128xf32, #tpu.memory_space<vmem>>, vector<16x128xf32>
      %36 = arith.addf %35, %34 : vector<16x128xf32>
      %c0_25 = arith.constant 0 : index
      %c0_26 = arith.constant 0 : index
      %37 = vector.load %arg9[%c0_25, %c0_26] : memref<16x128xf32, #tpu.memory_space<vmem>>, vector<16x128xf32>
      tpu.vector_store %arg9[%c0_25, %c0_26], %36 {strides = array<i32>} : memref<16x128xf32, #tpu.memory_space<vmem>>, vector<16x128xf32>,
    } else {
    }
    return
  }
  func.func @transform_0(%arg0: i32, %arg1: i32) -> (i32, i32) {
    %c0_i32 = arith.constant 0 : i32
    %c0_i32_0 = arith.constant 0 : i32
    return %arg0, %c0_i32 : i32, i32
  }
  func.func @transform_1(%arg0: i32, %arg1: i32) -> (i32, i32) {
    %c0_i32 = arith.constant 0 : i32
    %c0_i32_0 = arith.constant 0 : i32
    %c0_i32_1 = arith.constant 0 : i32
    return %c0_i32, %c0_i32_0 : i32, i32
  }
  func.func @transform_2(%arg0: i32, %arg1: i32) -> (i32, i32) {
    %c0_i32 = arith.constant 0 : i32
    %c0_i32_0 = arith.constant 0 : i32
    %c0_i32_1 = arith.constant 0 : i32
    return %c0_i32, %c0_i32_0 : i32, i32
  }
  func.func @transform_3(%arg0: i32, %arg1: i32) -> (i32, i32) {
    %c0_i32 = arith.constant 0 : i32
    %c0_i32_0 = arith.constant 0 : i32
    return %c0_i32, %arg1 : i32, i32
  }
  func.func @transform_4(%arg0: i32, %arg1: i32) -> (i32, i32) {
    %c0_i32 = arith.constant 0 : i32
    %c0_i32_0 = arith.constant 0 : i32
    return %c0_i32, %arg1 : i32, i32
  }
  func.func @transform_5(%arg0: i32, %arg1: i32) -> (i32, i32) {
    %c0_i32 = arith.constant 0 : i32
    %c0_i32_0 = arith.constant 0 : i32
    return %arg1, %c0_i32 : i32, i32
  }
  func.func @transform_6(%arg0: i32, %arg1: i32) -> (i32, i32) {
    %c0_i32 = arith.constant 0 : i32
    %c0_i32_0 = arith.constant 0 : i32
    %c0_i32_1 = arith.constant 0 : i32
    return %c0_i32, %c0_i32_0 : i32, i32
  }
  func.func @transform_7(%arg0: i32, %arg1: i32) -> (i32, i32) {
    %c0_i32 = arith.constant 0 : i32
    %c0_i32_0 = arith.constant 0 : i32
    return %arg0, %c0_i32 : i32, i32
  }
}

</mosaic_0001>

<llo_original>
// kernel: tpu_custom_call.1
$region0: #{tpu_custom_call.1}
  #allocation0 [shape = 'u32[]', space=smem, size = 0x4, offset = 0x4, fixed_abs, tag = 'smem constant byte address 0x4 - core index']
  #allocation1 [shape = 'u32[144,128]{1,0:T(1,128)}', space=vmem, size = 0x12000, scoped, tag = 'internal scratch']
  #allocation2 [shape = 'bf16[16,128]{1,0:T(16,128)(2,1)}', space=vmem, size = 0x1000, scoped, tag = 'scratch operand']
  #allocation3 [shape = 'f32[16,128]{1,0:T(8,128)}', space=vmem, size = 0x2000, scoped, tag = 'scratch operand']
  %s0 = inlined_call_operand.hbm [shape: f32[16,128], index: 0, kind: input, shape index: {}]
  %s1 = inlined_call_operand.hbm [shape: f32[1,128], index: 1, kind: input, shape index: {}]
  %s2 = inlined_call_operand.hbm [shape: f32[1,128], index: 2, kind: input, shape index: {}]
  %s3 = inlined_call_operand.hbm [shape: bf16[128,128], index: 3, kind: input, shape index: {}]
  %s4 = inlined_call_operand.hbm [shape: f32[1,128], index: 4, kind: input, shape index: {}]
  %s5 = inlined_call_operand.hbm [shape: bf16[128,128], index: 5, kind: input, shape index: {}]
  %s6 = inlined_call_operand.hbm [shape: f32[1,128], index: 6, kind: input, shape index: {}]
  %s7 = inlined_call_operand.hbm [shape: f32[16,128], index: 7, kind: output, shape index: {}]
  %s8 = sld [smem:[#allocation0]]
  $region74: #{tpu_custom_call.1} parent=0
    _
  %s10 = ssub.s32 1, %s8
  %s11 = scalar_select 0, %s10, %s8
  $region1: #{tpu_custom_call.1} parent=0
    #allocation4 [shape = 'u8[8192]{0}', space=vmem, size = 0x2000, scoped, tag = 'input window, operand 0, single buffered']
    #allocation5 [shape = 's32[1]{0}', space=sflag, size = 0x4, scoped, tag = 'scoped memory for tpu_custom_call.1']
    #allocation6 [shape = 's32[1]{0}', space=sflag, size = 0x4, scoped, tag = 'scoped memory for tpu_custom_call.1']
    #allocation7 [shape = 'u8[512]{0}', space=vmem, size = 0x400, scoped, tag = 'input window, operand 1, single buffered']
    #allocation8 [shape = 's32[1]{0}', space=sflag, size = 0x4, scoped, tag = 'scoped memory for tpu_custom_call.1']
    #allocation9 [shape = 'u8[512]{0}', space=vmem, size = 0x400, scoped, tag = 'input window, operand 2, single buffered']
    #allocation10 [shape = 'u8[32768]{0}', space=vmem, size = 0x8000, scoped, tag = 'input window, operand 3, single buffered']
    #allocation11 [shape = 's32[1]{0}', space=sflag, size = 0x4, scoped, tag = 'scoped memory for tpu_custom_call.1']
    #allocation12 [shape = 'u8[512]{0}', space=vmem, size = 0x400, scoped, tag = 'input window, operand 4, single buffered']
    #allocation13 [shape = 'u8[32768]{0}', space=vmem, size = 0x8000, scoped, tag = 'input window, operand 5, single buffered']
    #allocation14 [shape = 's32[1]{0}', space=sflag, size = 0x4, scoped, tag = 'scoped memory for tpu_custom_call.1']
    #allocation15 [shape = 'u8[512]{0}', space=vmem, size = 0x400, scoped, tag = 'input window, operand 6, single buffered']
    #allocation16 [shape = 'u8[8192]{0}', space=vmem, size = 0x2000, scoped, tag = 'output window, operand 0, single buffered']
    %12 = vsyncpa [#allocation5], 0
    %13 = vsyncpa [#allocation8], 0
    %14 = vsyncpa [#allocation11], 0
    %15 = vsyncpa [#allocation14], 0
    %16 = vsyncpa [#allocation6], 0
    // Predicated region
    $region2: #{tpu_custom_call.1} parent=1 // pred_check
      _
    $region3: #{tpu_custom_call.1} parent=1 // pred_check_branch
      %18 = sbr.rel (0) target = $region5
    $region4: #{tpu_custom_call.1} parent=1 // pred_region
      %s20 = ssub.s32 256, 256
      %21 = vsyncadd [#allocation5], %s20
      %s22 = sshll.u32 [#allocation4], 4
      %s23 = int_to_ptr.vmem [resolvable:$true] %s22
      %28 = dma.hbm_to_vmem [thread:$0]  %s0, 256, %s23, [#allocation5], 128, 128, 8
    $region5: #{tpu_custom_call.1} parent=1 // pred_fallthru
      _
    // Predicated region
    $region6: #{tpu_custom_call.1} parent=1 // pred_check
      _
    $region7: #{tpu_custom_call.1} parent=1 // pred_check_branch
      %30 = sbr.rel (0) target = $region9
    $region8: #{tpu_custom_call.1} parent=1 // pred_region
      %s32 = ssub.s32 16, 16
      %33 = vsyncadd [#allocation8], %s32
      %s35 = sshll.u32 [#allocation7], 4
      %s36 = int_to_ptr.vmem [resolvable:$true] %s35
      %38 = dma.hbm_to_vmem [thread:$0]  %s1, 16, %s36, [#allocation8]
    $region9: #{tpu_custom_call.1} parent=1 // pred_fallthru
      _
    // Predicated region
    $region10: #{tpu_custom_call.1} parent=1 // pred_check
      _
    $region11: #{tpu_custom_call.1} parent=1 // pred_check_branch
      %40 = sbr.rel (0) target = $region13
    $region12: #{tpu_custom_call.1} parent=1 // pred_region
      %s42 = ssub.s32 16, 16
      %43 = vsyncadd [#allocation8], %s42
      %s45 = sshll.u32 [#allocation9], 4
      %s46 = int_to_ptr.vmem [resolvable:$true] %s45
      %48 = dma.hbm_to_vmem [thread:$0]  %s2, 16, %s46, [#allocation8]
    $region13: #{tpu_custom_call.1} parent=1 // pred_fallthru
      _
    // Predicated region
    $region14: #{tpu_custom_call.1} parent=1 // pred_check
      _
    $region15: #{tpu_custom_call.1} parent=1 // pred_check_branch
      %50 = sbr.rel (0) target = $region17
    $region16: #{tpu_custom_call.1} parent=1 // pred_region
      %s52 = ssub.s32 1024, 1024
      %53 = vsyncadd [#allocation11], %s52
      %s54 = sshll.u32 [#allocation10], 4
      %s55 = int_to_ptr.vmem [resolvable:$true] %s54
      %60 = dma.hbm_to_vmem [thread:$0]  %s3, 1024, %s55, [#allocation11], 64, 64, 4
    $region17: #{tpu_custom_call.1} parent=1 // pred_fallthru
      _
    // Predicated region
    $region18: #{tpu_custom_call.1} parent=1 // pred_check
      _
    $region19: #{tpu_custom_call.1} parent=1 // pred_check_branch
      %62 = sbr.rel (0) target = $region21
    $region20: #{tpu_custom_call.1} parent=1 // pred_region
      %s64 = ssub.s32 16, 16
      %65 = vsyncadd [#allocation11], %s64
      %s67 = sshll.u32 [#allocation12], 4
      %s68 = int_to_ptr.vmem [resolvable:$true] %s67
      %70 = dma.hbm_to_vmem [thread:$0]  %s4, 16, %s68, [#allocation11]
    $region21: #{tpu_custom_call.1} parent=1 // pred_fallthru
      _
    // Predicated region
    $region22: #{tpu_custom_call.1} parent=1 // pred_check
      _
    $region23: #{tpu_custom_call.1} parent=1 // pred_check_branch
      %72 = sbr.rel (0) target = $region25
    $region24: #{tpu_custom_call.1} parent=1 // pred_region
      %s74 = ssub.s32 1024, 1024
      %75 = vsyncadd [#allocation14], %s74
      %s76 = sshll.u32 [#allocation13], 4
      %s77 = int_to_ptr.vmem [resolvable:$true] %s76
      %82 = dma.hbm_to_vmem [thread:$0]  %s5, 1024, %s77, [#allocation14], 64, 64, 4
    $region25: #{tpu_custom_call.1} parent=1 // pred_fallthru
      _
    // Predicated region
    $region26: #{tpu_custom_call.1} parent=1 // pred_check
      _
    $region27: #{tpu_custom_call.1} parent=1 // pred_check_branch
      %84 = sbr.rel (0) target = $region29
    $region28: #{tpu_custom_call.1} parent=1 // pred_region
      %s86 = ssub.s32 16, 16
      %87 = vsyncadd [#allocation14], %s86
      %s89 = sshll.u32 [#allocation15], 4
      %s90 = int_to_ptr.vmem [resolvable:$true] %s89
      %92 = dma.hbm_to_vmem [thread:$0]  %s6, 16, %s90, [#allocation14]
    $region29: #{tpu_custom_call.1} parent=1 // pred_fallthru
      _
    // Predicated region
    $region30: #{tpu_custom_call.1} parent=1 // pred_check
      _
    $region31: #{tpu_custom_call.1} parent=1 // pred_check_branch
      %94 = sbr.rel (0) target = $region33
    $region32: #{tpu_custom_call.1} parent=1 // pred_region
      %95 = dma.done [#allocation5], 256
    $region33: #{tpu_custom_call.1} parent=1 // pred_fallthru
      _
    // Predicated region
    $region34: #{tpu_custom_call.1} parent=1 // pred_check
      _
    $region35: #{tpu_custom_call.1} parent=1 // pred_check_branch
      %97 = sbr.rel (0) target = $region37
    $region36: #{tpu_custom_call.1} parent=1 // pred_region
      %98 = dma.done [#allocation8], 16
    $region37: #{tpu_custom_call.1} parent=1 // pred_fallthru
      _
    // Predicated region
    $region38: #{tpu_custom_call.1} parent=1 // pred_check
      _
    $region39: #{tpu_custom_call.1} parent=1 // pred_check_branch
      %100 = sbr.rel (0) target = $region41
    $region40: #{tpu_custom_call.1} parent=1 // pred_region
      %101 = dma.done [#allocation8], 16
    $region41: #{tpu_custom_call.1} parent=1 // pred_fallthru
      _
    // Predicated region
    $region42: #{tpu_custom_call.1} parent=1 // pred_check
      _
    $region43: #{tpu_custom_call.1} parent=1 // pred_check_branch
      %103 = sbr.rel (0) target = $region45
    $region44: #{tpu_custom_call.1} parent=1 // pred_region
      %104 = dma.done [#allocation11], 1024
    $region45: #{tpu_custom_call.1} parent=1 // pred_fallthru
      _
    // Predicated region
    $region46: #{tpu_custom_call.1} parent=1 // pred_check
      _
    $region47: #{tpu_custom_call.1} parent=1 // pred_check_branch
      %106 = sbr.rel (0) target = $region49
    $region48: #{tpu_custom_call.1} parent=1 // pred_region
      %107 = dma.done [#allocation11], 16
    $region49: #{tpu_custom_call.1} parent=1 // pred_fallthru
      _
    // Predicated region
    $region50: #{tpu_custom_call.1} parent=1 // pred_check
      _
    $region51: #{tpu_custom_call.1} parent=1 // pred_check_branch
      %109 = sbr.rel (0) target = $region53
    $region52: #{tpu_custom_call.1} parent=1 // pred_region
      %110 = dma.done [#allocation14], 1024
    $region53: #{tpu_custom_call.1} parent=1 // pred_fallthru
      _
    // Predicated region
    $region54: #{tpu_custom_call.1} parent=1 // pred_check
      _
    $region55: #{tpu_custom_call.1} parent=1 // pred_check_branch
      %112 = sbr.rel (0) target = $region57
    $region56: #{tpu_custom_call.1} parent=1 // pred_region
      %113 = dma.done [#allocation14], 16
    $region57: #{tpu_custom_call.1} parent=1 // pred_fallthru
      _
    %p115 = scmp.eq.s32.totalorder 0, 0
    // Predicated region
    $region58: #{tpu_custom_call.1} parent=1 // pred_check
      %p116 = pneg %p115
    $region59: #{tpu_custom_call.1} parent=1 // pred_check_branch
      %118 = sbr.rel (%p116) target = $region61
    $region60: #{tpu_custom_call.1} parent=1 // pred_region
      %v119 = vld [vmem:[#allocation4] sm:$0xff]
      %v120 = vld [vmem:[#allocation4 + $0x8] sm:$0xff]
      %v121 = vlaneseq
      %v122 = vand.u32 %v121, 127
      %vm123 = vcmp.lt.s32.totalorder %v122, 32
      %v124 = vsel %vm123, %v119, 0.0
      %v125 = vsel %vm123, %v120, 0.0
      %126 = vadd.xlane.f32.xlu0 %v124
      %v127 = vpop.xlane.xlu0 %126
      %128 = vadd.xlane.f32.xlu0 %v125
      %v129 = vpop.xlane.xlu0 %128
      %v130 = vmul.f32 %v127, 0.03125
      %v131 = vmul.f32 %v129, 0.03125
      %v132 = vsub.f32 %v119, %v130
      %v133 = vsub.f32 %v120, %v131
      %v134 = vsel %vm123, %v132, 0.0
      %v135 = vsel %vm123, %v133, 0.0
      %v136 = vmul.f32 %v134, %v134
      %v137 = vmul.f32 %v135, %v135
      %138 = vadd.xlane.f32.xlu0 %v136
      %v139 = vpop.xlane.xlu0 %138
      %140 = vadd.xlane.f32.xlu0 %v137
      %v141 = vpop.xlane.xlu0 %140
      %v142 = vmul.f32 %v139, 0.03125
      %v143 = vmul.f32 %v141, 0.03125
      %v144 = vadd.f32 %v142, 1e-05
      %v145 = vadd.f32 %v143, 1e-05
      %v146 = vrsqrt.pop %v144
      %v147 = vrsqrt.pop %v145
      %v148 = vmul.f32 %v134, %v146
      %v149 = vmul.f32 %v135, %v147
      %v150 = vld [vmem:[#allocation7] sm:$0x1]
      %v152 = vlaneseq
      %v153 = vshrl.u32 %v152, 7
      %v154 = vsub.s32 0, %v153
      %v155 = vrot.slane %v150, %v154
      %v157 = vmul.f32 %v148, %v155
      %v158 = vmul.f32 %v149, %v155
      %v159 = vld [vmem:[#allocation9] sm:$0x1]
      %v161 = vlaneseq
      %v162 = vshrl.u32 %v161, 7
      %v163 = vsub.s32 0, %v162
      %v164 = vrot.slane %v159, %v163
      %v166 = vadd.f32 %v157, %v164
      %v167 = vadd.f32 %v158, %v164
      %v168 = vpack.c.bf16 %v167, %v166
      %169 = vst [vmem:[#allocation2] sm:$0xff] %v168
      %170 = vst [vmem:[#allocation3] sm:$0xff] 0.0
      %171 = vst [vmem:[#allocation3 + $0x8] sm:$0xff] 0.0
    $region61: #{tpu_custom_call.1} parent=1 // pred_fallthru
      _
    %v172 = vld [vmem:[#allocation2] sm:$0xff]
    %v173 = vld [vmem:[#allocation10] sm:$0xf]
    %v174 = vld [vmem:[#allocation10 + $0x4] sm:$0xf]
    %v175 = vld [vmem:[#allocation10 + $0x8] sm:$0xf]
    %v176 = vld [vmem:[#allocation10 + $0xc] sm:$0xf]
    %v177 = vld [vmem:[#allocation10 + $0x10] sm:$0xf]
    %v178 = vld [vmem:[#allocation10 + $0x14] sm:$0xf]
    %v179 = vld [vmem:[#allocation10 + $0x18] sm:$0xf]
    %v180 = vld [vmem:[#allocation10 + $0x1c] sm:$0xf]
    %v181 = vld [vmem:[#allocation10 + $0x20] sm:$0xf]
    %v182 = vld [vmem:[#allocation10 + $0x24] sm:$0xf]
    %v183 = vld [vmem:[#allocation10 + $0x28] sm:$0xf]
    %v184 = vld [vmem:[#allocation10 + $0x2c] sm:$0xf]
    %v185 = vld [vmem:[#allocation10 + $0x30] sm:$0xf]
    %v186 = vld [vmem:[#allocation10 + $0x34] sm:$0xf]
    %v187 = vld [vmem:[#allocation10 + $0x38] sm:$0xf]
    %v188 = vld [vmem:[#allocation10 + $0x3c] sm:$0xf]
    %v189 = vld [vmem:[#allocation12] sm:$0x1]
    %v191 = vlaneseq
    %v192 = vshrl.u32 %v191, 7
    %v193 = vsub.s32 0, %v192
    %v194 = vrot.slane %v189, %v193
    %v212 = vunpack.c.l.b16 %v173
    %v213 = vunpack.c.l.b16 %v174
    %v214 = vunpack.c.l.b16 %v175
    %v215 = vunpack.c.l.b16 %v176
    %v216 = vunpack.c.l.b16 %v177
    %v217 = vunpack.c.l.b16 %v178
    %v218 = vunpack.c.l.b16 %v179
    %v219 = vunpack.c.l.b16 %v180
    %v220 = vunpack.c.l.b16 %v181
    %v221 = vunpack.c.l.b16 %v182
    %v222 = vunpack.c.l.b16 %v183
    %v223 = vunpack.c.l.b16 %v184
    %v224 = vunpack.c.l.b16 %v185
    %v225 = vunpack.c.l.b16 %v186
    %v226 = vunpack.c.l.b16 %v187
    %v227 = vunpack.c.l.b16 %v188
    %v228 = vpack.c.b16 %v213, %v212
    %v229 = vpack.c.b16 %v215, %v214
    %v230 = vpack.c.b16 %v217, %v216
    %v231 = vpack.c.b16 %v219, %v218
    %v232 = vpack.c.b16 %v221, %v220
    %v233 = vpack.c.b16 %v223, %v222
    %v234 = vpack.c.b16 %v225, %v224
    %v235 = vpack.c.b16 %v227, %v226
    %244 = vmatprep.subr.bf16.mxu0 0
    %245 = vmatpush1.bf16.msra.mxu0 %v228
    %246 = vmatprep.subr.bf16.mxu0 0
    %247 = vmatpush1.bf16.msra.mxu0 %v229
    %248 = vmatprep.subr.bf16.mxu0 0
    %249 = vmatpush1.bf16.msra.mxu0 %v230
    %250 = vmatprep.subr.bf16.mxu0 0
    %251 = vmatpush1.bf16.msra.mxu0 %v231
    %252 = vmatprep.subr.bf16.mxu0 0
    %253 = vmatpush1.bf16.msra.mxu0 %v232
    %254 = vmatprep.subr.bf16.mxu0 0
    %255 = vmatpush1.bf16.msra.mxu0 %v233
    %256 = vmatprep.subr.bf16.mxu0 0
    %257 = vmatpush1.bf16.msra.mxu0 %v234
    %258 = vmatprep.subr.bf16.mxu0 0
    %259 = vmatpush1.bf16.msra.mxu0 %v235
    %260 = vmatprep.subr.bf16.mxu0 0
    %261 = vmatpush1.bf16.msra.mxu0 0
    %262 = vmatprep.subr.bf16.mxu0 0
    %263 = vmatpush1.bf16.msra.mxu0 0
    %264 = vmatprep.subr.bf16.mxu0 0
    %265 = vmatpush1.bf16.msra.mxu0 0
    %266 = vmatprep.subr.bf16.mxu0 0
    %267 = vmatpush1.bf16.msra.mxu0 0
    %268 = vmatprep.subr.bf16.mxu0 0
    %269 = vmatpush1.bf16.msra.mxu0 0
    %270 = vmatprep.subr.bf16.mxu0 0
    %271 = vmatpush1.bf16.msra.mxu0 0
    %272 = vmatprep.subr.bf16.mxu0 0
    %273 = vmatpush1.bf16.msra.mxu0 0
    %274 = vmatprep.subr.bf16.mxu0 0
    %275 = vmatpush1.bf16.msra.mxu0 0
    %276 = vmatprep.mubr.bf16.mxu0 0
    %277 = vmatmul.mubr.bf16.gmra.mrb[0].mxu0 %v172
    %v278 = vpop.f32.mrb[0].mxu0
    %v279 = vadd.f32 %v194, %v278
    %v280 = vpop.f32.mrb[0].mxu0
    %v281 = vpop.f32.mrb[0].mxu0
    %v282 = vadd.f32 %v194, %v281
    %v283 = vpop.f32.mrb[0].mxu0
    %284 = vdwg.mxu0
    %v285 = vmul.f32 %v279, %v279
    %v286 = vmul.f32 %v282, %v282
    %v287 = vmul.f32 %v279, %v285
    %v288 = vmul.f32 %v282, %v286
    %v289 = vmul.f32 %v287, 0.044715
    %v290 = vmul.f32 %v288, 0.044715
    %v291 = vadd.f32 %v279, %v289
    %v292 = vadd.f32 %v282, %v290
    %v293 = vmul.f32 %v291, 0.7978846
    %v294 = vmul.f32 %v292, 0.7978846
    %v295 = vtanh.pop %v293
    %v296 = vtanh.pop %v294
    %v297 = vadd.f32 %v295, 1.0
    %v298 = vadd.f32 %v296, 1.0
    %v299 = vmul.f32 %v297, 0.5
    %v300 = vmul.f32 %v298, 0.5
    %v301 = vmul.f32 %v279, %v299
    %v302 = vmul.f32 %v282, %v300
    %v303 = vld [vmem:[#allocation3] sm:$0xff]
    %v304 = vld [vmem:[#allocation3 + $0x8] sm:$0xff]
    %v305 = vpack.c.bf16 %v302, %v301
    %v306 = vld [vmem:[#allocation13] sm:$0xf]
    %v307 = vld [vmem:[#allocation13 + $0x4] sm:$0xf]
    %v308 = vld [vmem:[#allocation13 + $0x8] sm:$0xf]
    %v309 = vld [vmem:[#allocation13 + $0xc] sm:$0xf]
    %v310 = vld [vmem:[#allocation13 + $0x10] sm:$0xf]
    %v311 = vld [vmem:[#allocation13 + $0x14] sm:$0xf]
    %v312 = vld [vmem:[#allocation13 + $0x18] sm:$0xf]
    %v313 = vld [vmem:[#allocation13 + $0x1c] sm:$0xf]
    %v314 = vld [vmem:[#allocation13 + $0x20] sm:$0xf]
    %v315 = vld [vmem:[#allocation13 + $0x24] sm:$0xf]
    %v316 = vld [vmem:[#allocation13 + $0x28] sm:$0xf]
    %v317 = vld [vmem:[#allocation13 + $0x2c] sm:$0xf]
    %v318 = vld [vmem:[#allocation13 + $0x30] sm:$0xf]
    %v319 = vld [vmem:[#allocation13 + $0x34] sm:$0xf]
    %v320 = vld [vmem:[#allocation13 + $0x38] sm:$0xf]
    %v321 = vld [vmem:[#allocation13 + $0x3c] sm:$0xf]
    %v338 = vunpack.c.l.b16 %v306
    %v339 = vunpack.c.l.b16 %v307
    %v340 = vunpack.c.l.b16 %v308
    %v341 = vunpack.c.l.b16 %v309
    %v342 = vunpack.c.l.b16 %v310
    %v343 = vunpack.c.l.b16 %v311
    %v344 = vunpack.c.l.b16 %v312
    %v345 = vunpack.c.l.b16 %v313
    %v346 = vunpack.c.l.b16 %v314
    %v347 = vunpack.c.l.b16 %v315
    %v348 = vunpack.c.l.b16 %v316
    %v349 = vunpack.c.l.b16 %v317
    %v350 = vunpack.c.l.b16 %v318
    %v351 = vunpack.c.l.b16 %v319
    %v352 = vunpack.c.l.b16 %v320
    %v353 = vunpack.c.l.b16 %v321
    %v354 = vpack.c.b16 %v339, %v338
    %v355 = vpack.c.b16 %v341, %v340
    %v356 = vpack.c.b16 %v343, %v342
    %v357 = vpack.c.b16 %v345, %v344
    %v358 = vpack.c.b16 %v347, %v346
    %v359 = vpack.c.b16 %v349, %v348
    %v360 = vpack.c.b16 %v351, %v350
    %v361 = vpack.c.b16 %v353, %v352
    %370 = vmatprep.subr.bf16.mxu0 0
    %371 = vmatpush1.bf16.msra.mxu0 %v354
    %372 = vmatprep.subr.bf16.mxu0 0
    %373 = vmatpush1.bf16.msra.mxu0 %v355
    %374 = vmatprep.subr.bf16.mxu0 0
    %375 = vmatpush1.bf16.msra.mxu0 %v356
    %376 = vmatprep.subr.bf16.mxu0 0
    %377 = vmatpush1.bf16.msra.mxu0 %v357
    %378 = vmatprep.subr.bf16.mxu0 0
    %379 = vmatpush1.bf16.msra.mxu0 %v358
    %380 = vmatprep.subr.bf16.mxu0 0
    %381 = vmatpush1.bf16.msra.mxu0 %v359
    %382 = vmatprep.subr.bf16.mxu0 0
    %383 = vmatpush1.bf16.msra.mxu0 %v360
    %384 = vmatprep.subr.bf16.mxu0 0
    %385 = vmatpush1.bf16.msra.mxu0 %v361
    %386 = vmatprep.subr.bf16.mxu0 0
    %387 = vmatpush1.bf16.msra.mxu0 0
    %388 = vmatprep.subr.bf16.mxu0 0
    %389 = vmatpush1.bf16.msra.mxu0 0
    %390 = vmatprep.subr.bf16.mxu0 0
    %391 = vmatpush1.bf16.msra.mxu0 0
    %392 = vmatprep.subr.bf16.mxu0 0
    %393 = vmatpush1.bf16.msra.mxu0 0
    %394 = vmatprep.subr.bf16.mxu0 0
    %395 = vmatpush1.bf16.msra.mxu0 0
    %396 = vmatprep.subr.bf16.mxu0 0
    %397 = vmatpush1.bf16.msra.mxu0 0
    %398 = vmatprep.subr.bf16.mxu0 0
    %399 = vmatpush1.bf16.msra.mxu0 0
    %400 = vmatprep.subr.bf16.mxu0 0
    %401 = vmatpush1.bf16.msra.mxu0 0
    %402 = vmatprep.mubr.bf16.mxu0 0
    %403 = vmatmul.mubr.bf16.gmra.mrb[0].mxu0 %v305
    %v404 = vpop.f32.mrb[0].mxu0
    %v405 = vadd.f32 0.0, %v404
    %v406 = vpop.f32.mrb[0].mxu0
    %v407 = vpop.f32.mrb[0].mxu0
    %v408 = vadd.f32 0.0, %v407
    %v409 = vpop.f32.mrb[0].mxu0
    %410 = vdwg.mxu0
    %v411 = vadd.f32 %v303, %v405
    %v412 = vadd.f32 %v304, %v408
    %413 = vst [vmem:[#allocation3] sm:$0xff] %v411
    %414 = vst [vmem:[#allocation3 + $0x8] sm:$0xff] %v412
    // Predicated region
    $region62: #{tpu_custom_call.1} parent=1 // pred_check
      %p415 = pneg %p115
    $region63: #{tpu_custom_call.1} parent=1 // pred_check_branch
      %417 = sbr.rel (%p415) target = $region65
    $region64: #{tpu_custom_call.1} parent=1 // pred_region
      %v418 = vld [vmem:[#allocation3] sm:$0xff]
      %v419 = vld [vmem:[#allocation3 + $0x8] sm:$0xff]
      %v420 = vld [vmem:[#allocation15] sm:$0x1]
      %v422 = vlaneseq
      %v423 = vshrl.u32 %v422, 7
      %v424 = vsub.s32 0, %v423
      %v425 = vrot.slane %v420, %v424
      %v427 = vadd.f32 %v418, %v425
      %v428 = vadd.f32 %v419, %v425
      %v429 = vld [vmem:[#allocation4] sm:$0xff]
      %v430 = vld [vmem:[#allocation4 + $0x8] sm:$0xff]
      %v431 = vadd.f32 %v429, %v427
      %v432 = vadd.f32 %v430, %v428
      %433 = vst [vmem:[#allocation16] sm:$0xff] %v431
      %434 = vst [vmem:[#allocation16 + $0x8] sm:$0xff] %v432
    $region65: #{tpu_custom_call.1} parent=1 // pred_fallthru
      _
    // Predicated region
    $region66: #{tpu_custom_call.1} parent=1 // pred_check
      _
    $region67: #{tpu_custom_call.1} parent=1 // pred_check_branch
      %436 = sbr.rel (0) target = $region69
    $region68: #{tpu_custom_call.1} parent=1 // pred_region
      %s438 = ssub.s32 256, 256
      %439 = vsyncadd [#allocation6], %s438
      %s440 = sshll.u32 [#allocation16], 4
      %s441 = int_to_ptr.vmem [resolvable:$true] %s440
      %446 = dma.vmem_to_hbm [thread:$0]  %s441, 256, %s7, [#allocation6], 128, 128, 8
    $region69: #{tpu_custom_call.1} parent=1 // pred_fallthru
      _
    // Predicated region
    $region70: #{tpu_custom_call.1} parent=1 // pred_check
      _
    $region71: #{tpu_custom_call.1} parent=1 // pred_check_branch
      %448 = sbr.rel (0) target = $region73
    $region72: #{tpu_custom_call.1} parent=1 // pred_region
      %449 = dma.done [#allocation6], 256
    $region73: #{tpu_custom_call.1} parent=1 // pred_fallthru
      _
    %450 = vsyncpa [#allocation5], 1
    %451 = vsyncpa [#allocation8], 1
    %452 = vsyncpa [#allocation11], 1
    %453 = vsyncpa [#allocation14], 1
    %454 = vsyncpa [#allocation6], 1

</llo_original>
